<compile_context>
chip_gen: v7x
topology: tpu7x:2x2x1
jax: 0.10.0
libtpu: 0.0.40
codegen_flags: <defaults>
</compile_context>

<pallas_src>
import math

import jax
import jax.numpy as jnp
from jax.experimental import pallas as pl
from jax.experimental.pallas import tpu as pltpu


def _activation_flags(num_linear_layers):
    """Replicates the build_MLP bug: ReLU only after linear layer i when i > 2."""
    return tuple(i > 2 for i in range(num_linear_layers))


def _round_up(x, m):
    return ((x + m - 1) // m) * m


def _resident_spec(shape):
    # Constant block index: fetched once, stays VMEM-resident across batch tiles.
    return pl.BlockSpec(shape, lambda i: (0, 0))


def _make_kernel(n_layers, act_flags, split_dim):
    n_rest = n_layers - 1

    def kernel(*refs):
        # refs = (obs_t, w0_fused, b0_fused,
        #         w_mu_1, b_mu_1, ..., w_ls_1, b_ls_1, ..., out)
        obs_t_ref = refs[0]
        w0_ref = refs[1]
        b0_ref = refs[2]
        rest = refs[3:]
        mu_refs = rest[:2 * n_rest]
        ls_refs = rest[2 * n_rest:4 * n_rest]
        out_ref = rest[4 * n_rest]

        x = obs_t_ref[...]  # (obs_dim, TB): batch on the lane axis.

        # Layer 0: both heads consume the same input -> one fused matmul.
        h0 = jnp.dot(w0_ref[...], x, preferred_element_type=jnp.float32) + b0_ref[...]
        if act_flags[0]:
            h0 = jnp.maximum(h0, 0.0)

        h_mu = h0[:split_dim, :]
        h_ls = h0[split_dim:, :]

        def run_tail(h, param_refs):
            for i in range(n_rest):
                w = param_refs[2 * i][...]       # (out_i, in_i)  torch layout
                b = param_refs[2 * i + 1][...]   # (out_i, 1)
                h = jnp.dot(w, h, preferred_element_type=jnp.float32) + b
                if act_flags[i + 1]:
                    h = jnp.maximum(h, 0.0)
            return h

        mu_t = run_tail(h_mu, mu_refs)            # (action_dim, TB)
        log_std_t = run_tail(h_ls, ls_refs)       # (action_dim, TB)
        sigma_t = jnp.exp(log_std_t)              # EUP slot; essentially free.

        # Single fused, lane-dense output slab: rows [0,A)=mu, [A,2A)=sigma.
        out_ref[...] = jnp.concatenate([mu_t, sigma_t], axis=0)

    return kernel


def gaussian_policy_forward(obs, mu_params, log_std_params, *, max_batch_tile=512):
    """Run GaussianPolicyMLP.forward in a single Pallas kernel.

    obs:                          (B, obs_dim) float32
    mu_params / log_std_params:   lists of (W, b) with W in PyTorch layout
                                  (out_i, in_i) and b of shape (out_i,).
    Returns (mu, sigma), both (B, action_dim) float32 — the parameters of the
    Normal distribution produced by forward().
    """
    n_layers = len(mu_params)
    act_flags = _activation_flags(n_layers)
    batch, obs_dim = obs.shape
    action_dim = mu_params[-1][0].shape[0]
    split_dim = mu_params[0][0].shape[0]  # layer-0 output width per head

    # Batch padding / tiling. Tile is either the full (8-padded) batch or a
    # multiple of 128, so every block obeys the (8,128) constraint.
    padded8 = _round_up(batch, 8)
    if padded8 <= max_batch_tile:
        tb = padded8
    else:
        tb = max(128, (max_batch_tile // 128) * 128)
    padded_b = _round_up(padded8, tb)
    num_tiles = padded_b // tb

    # Lane-dense layout: put the batch on the last (128-lane) axis.
    obs_t = jnp.zeros((obs_dim, padded_b), jnp.float32).at[:, :batch].set(obs.T)

    # Fused layer-0 parameters of both heads (shared input).
    w0 = jnp.concatenate(
        [jnp.asarray(mu_params[0][0], jnp.float32),
         jnp.asarray(log_std_params[0][0], jnp.float32)], axis=0)
    b0 = jnp.concatenate(
        [jnp.asarray(mu_params[0][1], jnp.float32),
         jnp.asarray(log_std_params[0][1], jnp.float32)], axis=0).reshape(-1, 1)

    operands = [obs_t, w0, b0]
    in_specs = [pl.BlockSpec((obs_dim, tb), lambda i: (0, i)),
                _resident_spec(w0.shape),
                _resident_spec(b0.shape)]

    for params in (mu_params, log_std_params):
        for w, b in params[1:]:
            w32 = jnp.asarray(w, jnp.float32)
            b_col = jnp.asarray(b, jnp.float32).reshape(-1, 1)
            operands += [w32, b_col]
            in_specs += [_resident_spec(w32.shape), _resident_spec(b_col.shape)]

    kernel = _make_kernel(n_layers, act_flags, split_dim)

    out = pl.pallas_call(
        kernel,
        grid=(num_tiles,),
        out_shape=jax.ShapeDtypeStruct((2 * action_dim, padded_b), jnp.float32),
        in_specs=in_specs,
        out_specs=pl.BlockSpec((2 * action_dim, tb), lambda i: (0, i)),
        compiler_params=pltpu.CompilerParams(
            dimension_semantics=("parallel",)),  # v7x: shard batch over 2 TCs
    )(*operands)

    mu = out[:action_dim, :batch].T
    sigma = out[action_dim:, :batch].T
    return mu, sigma


def init_params(key, sizes):
    """Synthetic parameters matching nn.Linear(sizes[i], sizes[i+1]) init.

    Returns (key, [(W(out,in), b(out,)), ...]) in PyTorch weight layout.
    """
    params = []
    for i in range(len(sizes) - 1):
        key, wk, bk = jax.random.split(key, 3)
        bound = 1.0 / math.sqrt(sizes[i])
        w = jax.random.uniform(wk, (sizes[i + 1], sizes[i]), jnp.float32, -bound, bound)
        b = jax.random.uniform(bk, (sizes[i + 1],), jnp.float32, -bound, bound)
        params.append((w, b))
    return key, params


def reference_forward(obs, mu_params, log_std_params):
    act_flags = _activation_flags(len(mu_params))

    def run(x, params):
        for (w, b), act in zip(params, act_flags):
            x = x @ w.T + b
            if act:
                x = jnp.maximum(x, 0.0)
        return x

    mu = run(obs, mu_params)
    log_std = run(obs, log_std_params)
    return mu, jnp.exp(log_std)


if __name__ == "__main__":
    key = jax.random.PRNGKey(0)

    obs_dim = 16
    hidden_sizes = [32, 32]
    action_dim = 8
    sizes = [obs_dim] + hidden_sizes + [action_dim]

    key, mu_params = init_params(key, sizes)
    key, ls_params = init_params(key, sizes)

    # TODO(synk): torch.distributions.Normal object itself is host-side; the
    # kernel emits its (mu, sigma) parameters, which fully define forward()'s output.

    # Small-batch test (single tile).
    key, obs_key = jax.random.split(key)
    obs = jax.random.normal(obs_key, (4, obs_dim), jnp.float32)
    mu, sigma = gaussian_policy_forward(obs, mu_params, ls_params)
    mu, sigma = jax.block_until_ready((mu, sigma))
    ref_mu, ref_sigma = reference_forward(obs, mu_params, ls_params)
    assert jnp.allclose(mu, ref_mu, atol=1e-5, rtol=1e-5)
    assert jnp.allclose(sigma, ref_sigma, atol=1e-5, rtol=1e-5)
    assert bool(jnp.all(sigma > 0.0))  # valid Normal scale

    # Multi-tile test (exercises batch tiling + parallel grid axis).
    key, obs_key2 = jax.random.split(key)
    obs2 = jax.random.normal(obs_key2, (300, obs_dim), jnp.float32)
    mu2, sigma2 = gaussian_policy_forward(obs2, mu_params, ls_params,
                                          max_batch_tile=128)
    mu2, sigma2 = jax.block_until_ready((mu2, sigma2))
    ref_mu2, ref_sigma2 = reference_forward(obs2, mu_params, ls_params)
    assert jnp.allclose(mu2, ref_mu2, atol=1e-5, rtol=1e-5)
    assert jnp.allclose(sigma2, ref_sigma2, atol=1e-5, rtol=1e-5)

    print("KERNEL_OK")
</pallas_src>

<mosaic_0001>
module attributes {stable_mosaic.version = 11 : i64} {
  func.func @kernel(%arg0: i32, %arg1: memref<16x8xf32, #tpu.memory_space<vmem>>, %arg2: memref<64x16xf32, #tpu.memory_space<vmem>>, %arg3: memref<64x1xf32, #tpu.memory_space<vmem>>, %arg4: memref<32x32xf32, #tpu.memory_space<vmem>>, %arg5: memref<32x1xf32, #tpu.memory_space<vmem>>, %arg6: memref<8x32xf32, #tpu.memory_space<vmem>>, %arg7: memref<8x1xf32, #tpu.memory_space<vmem>>, %arg8: memref<32x32xf32, #tpu.memory_space<vmem>>, %arg9: memref<32x1xf32, #tpu.memory_space<vmem>>, %arg10: memref<8x32xf32, #tpu.memory_space<vmem>>, %arg11: memref<8x1xf32, #tpu.memory_space<vmem>>, %arg12: memref<16x8xf32, #tpu.memory_space<vmem>>) attributes {dimension_semantics = [#tpu.dimension_semantics<parallel>], iteration_bounds = array<i64: 1>, scalar_prefetch = 0 : i64, scratch_operands = 0 : i64, tpu.core_type = #tpu.core_type<tc>, window_params = [{transform_indices = @transform_0, window_bounds = array<i64: 16, 8>}, {pipeline_mode = #tpu.pipeline_mode<synchronous>, transform_indices = @transform_1, window_bounds = array<i64: 64, 16>}, {pipeline_mode = #tpu.pipeline_mode<synchronous>, transform_indices = @transform_2, window_bounds = array<i64: 64, 1>}, {pipeline_mode = #tpu.pipeline_mode<synchronous>, transform_indices = @transform_3, window_bounds = array<i64: 32, 32>}, {pipeline_mode = #tpu.pipeline_mode<synchronous>, transform_indices = @transform_4, window_bounds = array<i64: 32, 1>}, {pipeline_mode = #tpu.pipeline_mode<synchronous>, transform_indices = @transform_5, window_bounds = array<i64: 8, 32>}, {pipeline_mode = #tpu.pipeline_mode<synchronous>, transform_indices = @transform_6, window_bounds = array<i64: 8, 1>}, {pipeline_mode = #tpu.pipeline_mode<synchronous>, transform_indices = @transform_7, window_bounds = array<i64: 32, 32>}, {pipeline_mode = #tpu.pipeline_mode<synchronous>, transform_indices = @transform_8, window_bounds = array<i64: 32, 1>}, {pipeline_mode = #tpu.pipeline_mode<synchronous>, transform_indices = @transform_9, window_bounds = array<i64: 8, 32>}, {pipeline_mode = #tpu.pipeline_mode<synchronous>, transform_indices = @transform_10, window_bounds = array<i64: 8, 1>}, {transform_indices = @transform_11, window_bounds = array<i64: 16, 8>}]} {
    %c0 = arith.constant 0 : index
    %c0_0 = arith.constant 0 : index
    %0 = vector.load %arg1[%c0, %c0_0] : memref<16x8xf32, #tpu.memory_space<vmem>>, vector<16x8xf32>
    %c0_1 = arith.constant 0 : index
    %c0_2 = arith.constant 0 : index
    %1 = vector.load %arg2[%c0_1, %c0_2] : memref<64x16xf32, #tpu.memory_space<vmem>>, vector<64x16xf32>
    %cst = arith.constant dense<0.000000e+00> : vector<64x8xf32>
    %2 = tpu.matmul %1, %0, %cst {dimension_numbers = #tpu.dot_dimension_numbers<[1], [0], [0], [1], [0, 0, 1, 1], [], []>} : vector<64x16xf32>, vector<16x8xf32>, vector<64x8xf32> -> vector<64x8xf32>
    %c0_3 = arith.constant 0 : index
    %c0_4 = arith.constant 0 : index
    %3 = vector.load %arg3[%c0_3, %c0_4] : memref<64x1xf32, #tpu.memory_space<vmem>>, vector<64x1xf32>
    %4 = vector.broadcast %3 : vector<64x1xf32> to vector<64x8xf32>
    %5 = arith.addf %2, %4 : vector<64x8xf32>
    %6 = vector.extract_strided_slice %5 {offsets = [0, 0], sizes = [32, 8], strides = [1, 1]} : vector<64x8xf32> to vector<32x8xf32>
    %7 = vector.extract_strided_slice %5 {offsets = [32, 0], sizes = [32, 8], strides = [1, 1]} : vector<64x8xf32> to vector<32x8xf32>
    %c0_5 = arith.constant 0 : index
    %c0_6 = arith.constant 0 : index
    %8 = vector.load %arg4[%c0_5, %c0_6] : memref<32x32xf32, #tpu.memory_space<vmem>>, vector<32x32xf32>
    %c0_7 = arith.constant 0 : index
    %c0_8 = arith.constant 0 : index
    %9 = vector.load %arg5[%c0_7, %c0_8] : memref<32x1xf32, #tpu.memory_space<vmem>>, vector<32x1xf32>
    %cst_9 = arith.constant dense<0.000000e+00> : vector<32x8xf32>
    %10 = tpu.matmul %8, %6, %cst_9 {dimension_numbers = #tpu.dot_dimension_numbers<[1], [0], [0], [1], [0, 0, 1, 1], [], []>} : vector<32x32xf32>, vector<32x8xf32>, vector<32x8xf32> -> vector<32x8xf32>
    %11 = vector.broadcast %9 : vector<32x1xf32> to vector<32x8xf32>
    %12 = arith.addf %10, %11 : vector<32x8xf32>
    %c0_10 = arith.constant 0 : index
    %c0_11 = arith.constant 0 : index
    %13 = vector.load %arg6[%c0_10, %c0_11] : memref<8x32xf32, #tpu.memory_space<vmem>>, vector<8x32xf32>
    %c0_12 = arith.constant 0 : index
    %c0_13 = arith.constant 0 : index
    %14 = vector.load %arg7[%c0_12, %c0_13] : memref<8x1xf32, #tpu.memory_space<vmem>>, vector<8x1xf32>
    %cst_14 = arith.constant dense<0.000000e+00> : vector<8x8xf32>
    %15 = tpu.matmul %13, %12, %cst_14 {dimension_numbers = #tpu.dot_dimension_numbers<[1], [0], [0], [1], [0, 0, 1, 1], [], []>} : vector<8x32xf32>, vector<32x8xf32>, vector<8x8xf32> -> vector<8x8xf32>
    %16 = vector.broadcast %14 : vector<8x1xf32> to vector<8x8xf32>
    %17 = arith.addf %15, %16 : vector<8x8xf32>
    %c0_15 = arith.constant 0 : index
    %c0_16 = arith.constant 0 : index
    %18 = vector.load %arg8[%c0_15, %c0_16] : memref<32x32xf32, #tpu.memory_space<vmem>>, vector<32x32xf32>
    %c0_17 = arith.constant 0 : index
    %c0_18 = arith.constant 0 : index
    %19 = vector.load %arg9[%c0_17, %c0_18] : memref<32x1xf32, #tpu.memory_space<vmem>>, vector<32x1xf32>
    %cst_19 = arith.constant dense<0.000000e+00> : vector<32x8xf32>
    %20 = tpu.matmul %18, %7, %cst_19 {dimension_numbers = #tpu.dot_dimension_numbers<[1], [0], [0], [1], [0, 0, 1, 1], [], []>} : vector<32x32xf32>, vector<32x8xf32>, vector<32x8xf32> -> vector<32x8xf32>
    %21 = vector.broadcast %19 : vector<32x1xf32> to vector<32x8xf32>
    %22 = arith.addf %20, %21 : vector<32x8xf32>
    %c0_20 = arith.constant 0 : index
    %c0_21 = arith.constant 0 : index
    %23 = vector.load %arg10[%c0_20, %c0_21] : memref<8x32xf32, #tpu.memory_space<vmem>>, vector<8x32xf32>
    %c0_22 = arith.constant 0 : index
    %c0_23 = arith.constant 0 : index
    %24 = vector.load %arg11[%c0_22, %c0_23] : memref<8x1xf32, #tpu.memory_space<vmem>>, vector<8x1xf32>
    %cst_24 = arith.constant dense<0.000000e+00> : vector<8x8xf32>
    %25 = tpu.matmul %23, %22, %cst_24 {dimension_numbers = #tpu.dot_dimension_numbers<[1], [0], [0], [1], [0, 0, 1, 1], [], []>} : vector<8x32xf32>, vector<32x8xf32>, vector<8x8xf32> -> vector<8x8xf32>
    %26 = vector.broadcast %24 : vector<8x1xf32> to vector<8x8xf32>
    %27 = arith.addf %25, %26 : vector<8x8xf32>
    %28 = math.exp %27 : vector<8x8xf32>
    %29 = tpu.concatenate %17, %28 in 0 : vector<8x8xf32>, vector<8x8xf32> -> vector<16x8xf32>
    %c0_25 = arith.constant 0 : index
    %c0_26 = arith.constant 0 : index
    %30 = vector.load %arg12[%c0_25, %c0_26] : memref<16x8xf32, #tpu.memory_space<vmem>>, vector<16x8xf32>
    tpu.vector_store %arg12[%c0_25, %c0_26], %29 {strides = array<i32>} : memref<16x8xf32, #tpu.memory_space<vmem>>, vector<16x8xf32>,
    return
  }
  func.func @transform_0(%arg0: i32) -> (i32, i32) {
    %c0_i32 = arith.constant 0 : i32
    %c0_i32_0 = arith.constant 0 : i32
    return %c0_i32, %arg0 : i32, i32
  }
  func.func @transform_1(%arg0: i32) -> (i32, i32) {
    %c0_i32 = arith.constant 0 : i32
    %c0_i32_0 = arith.constant 0 : i32
    %c0_i32_1 = arith.constant 0 : i32
    return %c0_i32, %c0_i32_0 : i32, i32
  }
  func.func @transform_2(%arg0: i32) -> (i32, i32) {
    %c0_i32 = arith.constant 0 : i32
    %c0_i32_0 = arith.constant 0 : i32
    %c0_i32_1 = arith.constant 0 : i32
    return %c0_i32, %c0_i32_0 : i32, i32
  }
  func.func @transform_3(%arg0: i32) -> (i32, i32) {
    %c0_i32 = arith.constant 0 : i32
    %c0_i32_0 = arith.constant 0 : i32
    %c0_i32_1 = arith.constant 0 : i32
    return %c0_i32, %c0_i32_0 : i32, i32
  }
  func.func @transform_4(%arg0: i32) -> (i32, i32) {
    %c0_i32 = arith.constant 0 : i32
    %c0_i32_0 = arith.constant 0 : i32
    %c0_i32_1 = arith.constant 0 : i32
    return %c0_i32, %c0_i32_0 : i32, i32
  }
  func.func @transform_5(%arg0: i32) -> (i32, i32) {
    %c0_i32 = arith.constant 0 : i32
    %c0_i32_0 = arith.constant 0 : i32
    %c0_i32_1 = arith.constant 0 : i32
    return %c0_i32, %c0_i32_0 : i32, i32
  }
  func.func @transform_6(%arg0: i32) -> (i32, i32) {
    %c0_i32 = arith.constant 0 : i32
    %c0_i32_0 = arith.constant 0 : i32
    %c0_i32_1 = arith.constant 0 : i32
    return %c0_i32, %c0_i32_0 : i32, i32
  }
  func.func @transform_7(%arg0: i32) -> (i32, i32) {
    %c0_i32 = arith.constant 0 : i32
    %c0_i32_0 = arith.constant 0 : i32
    %c0_i32_1 = arith.constant 0 : i32
    return %c0_i32, %c0_i32_0 : i32, i32
  }
  func.func @transform_8(%arg0: i32) -> (i32, i32) {
    %c0_i32 = arith.constant 0 : i32
    %c0_i32_0 = arith.constant 0 : i32
    %c0_i32_1 = arith.constant 0 : i32
    return %c0_i32, %c0_i32_0 : i32, i32
  }
  func.func @transform_9(%arg0: i32) -> (i32, i32) {
    %c0_i32 = arith.constant 0 : i32
    %c0_i32_0 = arith.constant 0 : i32
    %c0_i32_1 = arith.constant 0 : i32
    return %c0_i32, %c0_i32_0 : i32, i32
  }
  func.func @transform_10(%arg0: i32) -> (i32, i32) {
    %c0_i32 = arith.constant 0 : i32
    %c0_i32_0 = arith.constant 0 : i32
    %c0_i32_1 = arith.constant 0 : i32
    return %c0_i32, %c0_i32_0 : i32, i32
  }
  func.func @transform_11(%arg0: i32) -> (i32, i32) {
    %c0_i32 = arith.constant 0 : i32
    %c0_i32_0 = arith.constant 0 : i32
    return %c0_i32, %arg0 : i32, i32
  }
}

</mosaic_0001>

<llo_original>
// kernel: tpu_custom_call.1
$region0: #{tpu_custom_call.1}
  #allocation0 [shape = 'u32[]', space=smem, size = 0x4, offset = 0x4, fixed_abs, tag = 'smem constant byte address 0x4 - core index']
  #allocation1 [shape = 'u32[144,128]{1,0:T(1,128)}', space=vmem, size = 0x12000, scoped, tag = 'internal scratch']
  %s0 = inlined_call_operand.vmem [shape: f32[16,8], index: 0, kind: input, shape index: {}]
  %s1 = inlined_call_operand.vmem [shape: f32[64,16], index: 1, kind: input, shape index: {}]
  %s2 = inlined_call_operand.vmem [shape: f32[64,1], index: 2, kind: input, shape index: {}]
  %s3 = inlined_call_operand.vmem [shape: f32[32,32], index: 3, kind: input, shape index: {}]
  %s4 = inlined_call_operand.vmem [shape: f32[32,1], index: 4, kind: input, shape index: {}]
  %s5 = inlined_call_operand.vmem [shape: f32[8,32], index: 5, kind: input, shape index: {}]
  %s6 = inlined_call_operand.vmem [shape: f32[8,1], index: 6, kind: input, shape index: {}]
  %s7 = inlined_call_operand.vmem [shape: f32[32,32], index: 7, kind: input, shape index: {}]
  %s8 = inlined_call_operand.vmem [shape: f32[32,1], index: 8, kind: input, shape index: {}]
  %s9 = inlined_call_operand.vmem [shape: f32[8,32], index: 9, kind: input, shape index: {}]
  %s10 = inlined_call_operand.vmem [shape: f32[8,1], index: 10, kind: input, shape index: {}]
  %s11 = inlined_call_operand.vmem [shape: f32[16,8], index: 11, kind: output, shape index: {}]
  %s12 = sld [smem:[#allocation0]]
  $region54: #{tpu_custom_call.1} parent=0
    _
  %s14 = ssub.s32 1, %s12
  %s15 = scalar_select 0, %s14, %s12
  // Predicated region
  $region2: #{tpu_custom_call.1} parent=0 // pred_check
    _
  $region3: #{tpu_custom_call.1} parent=0 // pred_check_branch
    %17 = sbr.rel (0) target = $region5
  $region4: #{tpu_custom_call.1} parent=0 // pred_region
    _
  $region5: #{tpu_custom_call.1} parent=0 // pred_fallthru
    _
  // Predicated region
  $region6: #{tpu_custom_call.1} parent=0 // pred_check
    _
  $region7: #{tpu_custom_call.1} parent=0 // pred_check_branch
    %19 = sbr.rel (0) target = $region9
  $region8: #{tpu_custom_call.1} parent=0 // pred_region
    _
  $region9: #{tpu_custom_call.1} parent=0 // pred_fallthru
    _
  // Predicated region
  $region10: #{tpu_custom_call.1} parent=0 // pred_check
    _
  $region11: #{tpu_custom_call.1} parent=0 // pred_check_branch
    %21 = sbr.rel (0) target = $region13
  $region12: #{tpu_custom_call.1} parent=0 // pred_region
    _
  $region13: #{tpu_custom_call.1} parent=0 // pred_fallthru
    _
  // Predicated region
  $region14: #{tpu_custom_call.1} parent=0 // pred_check
    _
  $region15: #{tpu_custom_call.1} parent=0 // pred_check_branch
    %23 = sbr.rel (0) target = $region17
  $region16: #{tpu_custom_call.1} parent=0 // pred_region
    _
  $region17: #{tpu_custom_call.1} parent=0 // pred_fallthru
    _
  // Predicated region
  $region18: #{tpu_custom_call.1} parent=0 // pred_check
    _
  $region19: #{tpu_custom_call.1} parent=0 // pred_check_branch
    %25 = sbr.rel (0) target = $region21
  $region20: #{tpu_custom_call.1} parent=0 // pred_region
    _
  $region21: #{tpu_custom_call.1} parent=0 // pred_fallthru
    _
  // Predicated region
  $region22: #{tpu_custom_call.1} parent=0 // pred_check
    _
  $region23: #{tpu_custom_call.1} parent=0 // pred_check_branch
    %27 = sbr.rel (0) target = $region25
  $region24: #{tpu_custom_call.1} parent=0 // pred_region
    _
  $region25: #{tpu_custom_call.1} parent=0 // pred_fallthru
    _
  // Predicated region
  $region26: #{tpu_custom_call.1} parent=0 // pred_check
    _
  $region27: #{tpu_custom_call.1} parent=0 // pred_check_branch
    %29 = sbr.rel (0) target = $region29
  $region28: #{tpu_custom_call.1} parent=0 // pred_region
    _
  $region29: #{tpu_custom_call.1} parent=0 // pred_fallthru
    _
  // Predicated region
  $region30: #{tpu_custom_call.1} parent=0 // pred_check
    _
  $region31: #{tpu_custom_call.1} parent=0 // pred_check_branch
    %31 = sbr.rel (0) target = $region33
  $region32: #{tpu_custom_call.1} parent=0 // pred_region
    _
  $region33: #{tpu_custom_call.1} parent=0 // pred_fallthru
    _
  // Predicated region
  $region34: #{tpu_custom_call.1} parent=0 // pred_check
    _
  $region35: #{tpu_custom_call.1} parent=0 // pred_check_branch
    %33 = sbr.rel (0) target = $region37
  $region36: #{tpu_custom_call.1} parent=0 // pred_region
    _
  $region37: #{tpu_custom_call.1} parent=0 // pred_fallthru
    _
  // Predicated region
  $region38: #{tpu_custom_call.1} parent=0 // pred_check
    _
  $region39: #{tpu_custom_call.1} parent=0 // pred_check_branch
    %35 = sbr.rel (0) target = $region41
  $region40: #{tpu_custom_call.1} parent=0 // pred_region
    _
  $region41: #{tpu_custom_call.1} parent=0 // pred_fallthru
    _
  // Predicated region
  $region42: #{tpu_custom_call.1} parent=0 // pred_check
    _
  $region43: #{tpu_custom_call.1} parent=0 // pred_check_branch
    %37 = sbr.rel (0) target = $region45
  $region44: #{tpu_custom_call.1} parent=0 // pred_region
    _
  $region45: #{tpu_custom_call.1} parent=0 // pred_fallthru
    _
  %v38 = vld [vmem:[%s0] sm:$0xff]
  %v39 = vld [vmem:[%s0 + $0x8] sm:$0xff]
  %v40 = vld [vmem:[%s1] sm:$0xff]
  %v41 = vld [vmem:[%s1 + $0x8] sm:$0xff]
  %v42 = vld [vmem:[%s1 + $0x10] sm:$0xff]
  %v43 = vld [vmem:[%s1 + $0x18] sm:$0xff]
  %v44 = vld [vmem:[%s1 + $0x20] sm:$0xff]
  %v45 = vld [vmem:[%s1 + $0x28] sm:$0xff]
  %v46 = vld [vmem:[%s1 + $0x30] sm:$0xff]
  %v47 = vld [vmem:[%s1 + $0x38] sm:$0xff]
  %v48 = vld [vmem:[%s2] sm:$0xff]
  %v49 = vld [vmem:[%s2 + $0x8] sm:$0xff]
  %v50 = vld [vmem:[%s2 + $0x10] sm:$0xff]
  %v51 = vld [vmem:[%s2 + $0x18] sm:$0xff]
  %v52 = vld [vmem:[%s2 + $0x20] sm:$0xff]
  %v53 = vld [vmem:[%s2 + $0x28] sm:$0xff]
  %v54 = vld [vmem:[%s2 + $0x30] sm:$0xff]
  %v55 = vld [vmem:[%s2 + $0x38] sm:$0xff]
  %57 = vset.pattern.permute.xlu0 0
  %58 = vperm.xlu0 %57, %v48
  %v59 = vpop.permute.xlu0 %58
  %62 = vset.pattern.permute.xlu0 0
  %63 = vperm.xlu0 %62, %v49
  %v64 = vpop.permute.xlu0 %63
  %67 = vset.pattern.permute.xlu0 0
  %68 = vperm.xlu0 %67, %v50
  %v69 = vpop.permute.xlu0 %68
  %72 = vset.pattern.permute.xlu0 0
  %73 = vperm.xlu0 %72, %v51
  %v74 = vpop.permute.xlu0 %73
  %77 = vset.pattern.permute.xlu0 0
  %78 = vperm.xlu0 %77, %v52
  %v79 = vpop.permute.xlu0 %78
  %82 = vset.pattern.permute.xlu0 0
  %83 = vperm.xlu0 %82, %v53
  %v84 = vpop.permute.xlu0 %83
  %87 = vset.pattern.permute.xlu0 0
  %88 = vperm.xlu0 %87, %v54
  %v89 = vpop.permute.xlu0 %88
  %92 = vset.pattern.permute.xlu0 0
  %93 = vperm.xlu0 %92, %v55
  %v94 = vpop.permute.xlu0 %93
  %vm96 = vcmask 130048
  %v98 = vsel %vm96, %v40, 0
  %v101 = vsel %vm96, %v41, 0
  %v104 = vsel %vm96, %v42, 0
  %v107 = vsel %vm96, %v43, 0
  %v110 = vsel %vm96, %v44, 0
  %v113 = vsel %vm96, %v45, 0
  %v116 = vsel %vm96, %v46, 0
  %v119 = vsel %vm96, %v47, 0
  %121 = vmatprep.subr.mxu0 0.0
  %122 = vmatpush1.msra.mxu0 %v38
  %123 = vmatprep.subr.mxu0 0.0
  %124 = vmatpush1.msra.mxu0 %v39
  %125 = vmatprep.subr.mxu0 0.0
  %126 = vmatpush1.msra.mxu0 0.0
  %127 = vmatprep.subr.mxu0 0.0
  %128 = vmatpush1.msra.mxu0 0.0
  %129 = vmatprep.subr.mxu0 0.0
  %130 = vmatpush1.msra.mxu0 0.0
  %131 = vmatprep.subr.mxu0 0.0
  %132 = vmatpush1.msra.mxu0 0.0
  %133 = vmatprep.subr.mxu0 0.0
  %134 = vmatpush1.msra.mxu0 0.0
  %135 = vmatprep.subr.mxu0 0.0
  %136 = vmatpush1.msra.mxu0 0.0
  %137 = vmatprep.subr.mxu0 0.0
  %138 = vmatpush1.msra.mxu0 0.0
  %139 = vmatprep.subr.mxu0 0.0
  %140 = vmatpush1.msra.mxu0 0.0
  %141 = vmatprep.subr.mxu0 0.0
  %142 = vmatpush1.msra.mxu0 0.0
  %143 = vmatprep.subr.mxu0 0.0
  %144 = vmatpush1.msra.mxu0 0.0
  %145 = vmatprep.subr.mxu0 0.0
  %146 = vmatpush1.msra.mxu0 0.0
  %147 = vmatprep.subr.mxu0 0.0
  %148 = vmatpush1.msra.mxu0 0.0
  %149 = vmatprep.subr.mxu0 0.0
  %150 = vmatpush1.msra.mxu0 0.0
  %151 = vmatprep.subr.mxu0 0.0
  %152 = vmatpush1.msra.mxu0 0.0
  %153 = vmatprep.subr.mxu0 0.0
  %154 = vmatpush1.msra.mxu0 0.0
  %155 = vmatprep.subr.mxu0 0.0
  %156 = vmatpush1.msra.mxu0 0.0
  %157 = vmatprep.subr.mxu0 0.0
  %158 = vmatpush1.msra.mxu0 0.0
  %159 = vmatprep.subr.mxu0 0.0
  %160 = vmatpush1.msra.mxu0 0.0
  %161 = vmatprep.subr.mxu0 0.0
  %162 = vmatpush1.msra.mxu0 0.0
  %163 = vmatprep.subr.mxu0 0.0
  %164 = vmatpush1.msra.mxu0 0.0
  %165 = vmatprep.subr.mxu0 0.0
  %166 = vmatpush1.msra.mxu0 0.0
  %167 = vmatprep.subr.mxu0 0.0
  %168 = vmatpush1.msra.mxu0 0.0
  %169 = vmatprep.subr.mxu0 0.0
  %170 = vmatpush1.msra.mxu0 0.0
  %171 = vmatprep.subr.mxu0 0.0
  %172 = vmatpush1.msra.mxu0 0.0
  %173 = vmatprep.subr.mxu0 0.0
  %174 = vmatpush1.msra.mxu0 0.0
  %175 = vmatprep.subr.mxu0 0.0
  %176 = vmatpush1.msra.mxu0 0.0
  %177 = vmatprep.subr.mxu0 0.0
  %178 = vmatpush1.msra.mxu0 0.0
  %179 = vmatprep.subr.mxu0 0.0
  %180 = vmatpush1.msra.mxu0 0.0
  %181 = vmatprep.subr.mxu0 0.0
  %182 = vmatpush1.msra.mxu0 0.0
  %183 = vmatprep.subr.mxu0 0.0
  %184 = vmatpush1.msra.mxu0 0.0
  %185 = vmatprep.mubr.f32.mxu0 0.0
  %186 = vmatmul.mubr.f32.gmra.mrb[0].mxu0 %v98
  %v187 = vpop.f32.mrb[0].mxu0
  %v188 = vadd.f32 %v59, %v187
  %v189 = vpop.f32.mrb[0].mxu0
  %190 = vmatprep.mubr.f32.mxu0 0.0
  %191 = vmatmul.mubr.f32.gmra.mrb[0].mxu0 %v101
  %v192 = vpop.f32.mrb[0].mxu0
  %v193 = vadd.f32 %v64, %v192
  %v194 = vpop.f32.mrb[0].mxu0
  %195 = vmatprep.mubr.f32.mxu0 0.0
  %196 = vmatmul.mubr.f32.gmra.mrb[0].mxu0 %v104
  %v197 = vpop.f32.mrb[0].mxu0
  %v198 = vadd.f32 %v69, %v197
  %v199 = vpop.f32.mrb[0].mxu0
  %200 = vmatprep.mubr.f32.mxu0 0.0
  %201 = vmatmul.mubr.f32.gmra.mrb[0].mxu0 %v107
  %v202 = vpop.f32.mrb[0].mxu0
  %v203 = vadd.f32 %v74, %v202
  %v204 = vpop.f32.mrb[0].mxu0
  %205 = vmatprep.mubr.f32.mxu0 0.0
  %206 = vmatmul.mubr.f32.gmra.mrb[0].mxu0 %v110
  %v207 = vpop.f32.mrb[0].mxu0
  %v208 = vadd.f32 %v79, %v207
  %v209 = vpop.f32.mrb[0].mxu0
  %210 = vmatprep.mubr.f32.mxu0 0.0
  %211 = vmatmul.mubr.f32.gmra.mrb[0].mxu0 %v113
  %v212 = vpop.f32.mrb[0].mxu0
  %v213 = vadd.f32 %v84, %v212
  %v214 = vpop.f32.mrb[0].mxu0
  %215 = vmatprep.mubr.f32.mxu0 0.0
  %216 = vmatmul.mubr.f32.gmra.mrb[0].mxu0 %v116
  %v217 = vpop.f32.mrb[0].mxu0
  %v218 = vadd.f32 %v89, %v217
  %v219 = vpop.f32.mrb[0].mxu0
  %220 = vmatprep.mubr.f32.mxu0 0.0
  %221 = vmatmul.mubr.f32.gmra.mrb[0].mxu0 %v119
  %v222 = vpop.f32.mrb[0].mxu0
  %v223 = vadd.f32 %v94, %v222
  %v224 = vpop.f32.mrb[0].mxu0
  %225 = vdwg.mxu0
  %v226 = vld [vmem:[%s3] sm:$0xff]
  %v227 = vld [vmem:[%s3 + $0x8] sm:$0xff]
  %v228 = vld [vmem:[%s3 + $0x10] sm:$0xff]
  %v229 = vld [vmem:[%s3 + $0x18] sm:$0xff]
  %v230 = vld [vmem:[%s4] sm:$0xff]
  %v231 = vld [vmem:[%s4 + $0x8] sm:$0xff]
  %v232 = vld [vmem:[%s4 + $0x10] sm:$0xff]
  %v233 = vld [vmem:[%s4 + $0x18] sm:$0xff]
  %235 = vset.pattern.permute.xlu0 0
  %236 = vperm.xlu0 %235, %v230
  %v237 = vpop.permute.xlu0 %236
  %240 = vset.pattern.permute.xlu0 0
  %241 = vperm.xlu0 %240, %v231
  %v242 = vpop.permute.xlu0 %241
  %245 = vset.pattern.permute.xlu0 0
  %246 = vperm.xlu0 %245, %v232
  %v247 = vpop.permute.xlu0 %246
  %250 = vset.pattern.permute.xlu0 0
  %251 = vperm.xlu0 %250, %v233
  %v252 = vpop.permute.xlu0 %251
  %vm254 = vcmask 261120
  %v256 = vsel %vm254, %v226, 0
  %v259 = vsel %vm254, %v227, 0
  %v262 = vsel %vm254, %v228, 0
  %v265 = vsel %vm254, %v229, 0
  %267 = vmatprep.subr.mxu0 0.0
  %268 = vmatpush1.msra.mxu0 %v188
  %269 = vmatprep.subr.mxu0 0.0
  %270 = vmatpush1.msra.mxu0 %v193
  %271 = vmatprep.subr.mxu0 0.0
  %272 = vmatpush1.msra.mxu0 %v198
  %273 = vmatprep.subr.mxu0 0.0
  %274 = vmatpush1.msra.mxu0 %v203
  %275 = vmatprep.subr.mxu0 0.0
  %276 = vmatpush1.msra.mxu0 0.0
  %277 = vmatprep.subr.mxu0 0.0
  %278 = vmatpush1.msra.mxu0 0.0
  %279 = vmatprep.subr.mxu0 0.0
  %280 = vmatpush1.msra.mxu0 0.0
  %281 = vmatprep.subr.mxu0 0.0
  %282 = vmatpush1.msra.mxu0 0.0
  %283 = vmatprep.subr.mxu0 0.0
  %284 = vmatpush1.msra.mxu0 0.0
  %285 = vmatprep.subr.mxu0 0.0
  %286 = vmatpush1.msra.mxu0 0.0
  %287 = vmatprep.subr.mxu0 0.0
  %288 = vmatpush1.msra.mxu0 0.0
  %289 = vmatprep.subr.mxu0 0.0
  %290 = vmatpush1.msra.mxu0 0.0
  %291 = vmatprep.subr.mxu0 0.0
  %292 = vmatpush1.msra.mxu0 0.0
  %293 = vmatprep.subr.mxu0 0.0
  %294 = vmatpush1.msra.mxu0 0.0
  %295 = vmatprep.subr.mxu0 0.0
  %296 = vmatpush1.msra.mxu0 0.0
  %297 = vmatprep.subr.mxu0 0.0
  %298 = vmatpush1.msra.mxu0 0.0
  %299 = vmatprep.subr.mxu0 0.0
  %300 = vmatpush1.msra.mxu0 0.0
  %301 = vmatprep.subr.mxu0 0.0
  %302 = vmatpush1.msra.mxu0 0.0
  %303 = vmatprep.subr.mxu0 0.0
  %304 = vmatpush1.msra.mxu0 0.0
  %305 = vmatprep.subr.mxu0 0.0
  %306 = vmatpush1.msra.mxu0 0.0
  %307 = vmatprep.subr.mxu0 0.0
  %308 = vmatpush1.msra.mxu0 0.0
  %309 = vmatprep.subr.mxu0 0.0
  %310 = vmatpush1.msra.mxu0 0.0
  %311 = vmatprep.subr.mxu0 0.0
  %312 = vmatpush1.msra.mxu0 0.0
  %313 = vmatprep.subr.mxu0 0.0
  %314 = vmatpush1.msra.mxu0 0.0
  %315 = vmatprep.subr.mxu0 0.0
  %316 = vmatpush1.msra.mxu0 0.0
  %317 = vmatprep.subr.mxu0 0.0
  %318 = vmatpush1.msra.mxu0 0.0
  %319 = vmatprep.subr.mxu0 0.0
  %320 = vmatpush1.msra.mxu0 0.0
  %321 = vmatprep.subr.mxu0 0.0
  %322 = vmatpush1.msra.mxu0 0.0
  %323 = vmatprep.subr.mxu0 0.0
  %324 = vmatpush1.msra.mxu0 0.0
  %325 = vmatprep.subr.mxu0 0.0
  %326 = vmatpush1.msra.mxu0 0.0
  %327 = vmatprep.subr.mxu0 0.0
  %328 = vmatpush1.msra.mxu0 0.0
  %329 = vmatprep.subr.mxu0 0.0
  %330 = vmatpush1.msra.mxu0 0.0
  %331 = vmatprep.mubr.f32.mxu0 0.0
  %332 = vmatmul.mubr.f32.gmra.mrb[0].mxu0 %v256
  %v333 = vpop.f32.mrb[0].mxu0
  %v334 = vadd.f32 %v237, %v333
  %v335 = vpop.f32.mrb[0].mxu0
  %336 = vmatprep.mubr.f32.mxu0 0.0
  %337 = vmatmul.mubr.f32.gmra.mrb[0].mxu0 %v259
  %v338 = vpop.f32.mrb[0].mxu0
  %v339 = vadd.f32 %v242, %v338
  %v340 = vpop.f32.mrb[0].mxu0
  %341 = vmatprep.mubr.f32.mxu0 0.0
  %342 = vmatmul.mubr.f32.gmra.mrb[0].mxu0 %v262
  %v343 = vpop.f32.mrb[0].mxu0
  %v344 = vadd.f32 %v247, %v343
  %v345 = vpop.f32.mrb[0].mxu0
  %346 = vmatprep.mubr.f32.mxu0 0.0
  %347 = vmatmul.mubr.f32.gmra.mrb[0].mxu0 %v265
  %v348 = vpop.f32.mrb[0].mxu0
  %v349 = vadd.f32 %v252, %v348
  %v350 = vpop.f32.mrb[0].mxu0
  %351 = vdwg.mxu0
  %v352 = vld [vmem:[%s5] sm:$0xff]
  %v353 = vld [vmem:[%s6] sm:$0xff]
  %355 = vset.pattern.permute.xlu0 0
  %356 = vperm.xlu0 %355, %v353
  %v357 = vpop.permute.xlu0 %356
  %v360 = vsel %vm254, %v352, 0
  %362 = vmatprep.subr.mxu0 0.0
  %363 = vmatpush1.msra.mxu0 %v334
  %364 = vmatprep.subr.mxu0 0.0
  %365 = vmatpush1.msra.mxu0 %v339
  %366 = vmatprep.subr.mxu0 0.0
  %367 = vmatpush1.msra.mxu0 %v344
  %368 = vmatprep.subr.mxu0 0.0
  %369 = vmatpush1.msra.mxu0 %v349
  %370 = vmatprep.subr.mxu0 0.0
  %371 = vmatpush1.msra.mxu0 0.0
  %372 = vmatprep.subr.mxu0 0.0
  %373 = vmatpush1.msra.mxu0 0.0
  %374 = vmatprep.subr.mxu0 0.0
  %375 = vmatpush1.msra.mxu0 0.0
  %376 = vmatprep.subr.mxu0 0.0
  %377 = vmatpush1.msra.mxu0 0.0
  %378 = vmatprep.subr.mxu0 0.0
  %379 = vmatpush1.msra.mxu0 0.0
  %380 = vmatprep.subr.mxu0 0.0
  %381 = vmatpush1.msra.mxu0 0.0
  %382 = vmatprep.subr.mxu0 0.0
  %383 = vmatpush1.msra.mxu0 0.0
  %384 = vmatprep.subr.mxu0 0.0
  %385 = vmatpush1.msra.mxu0 0.0
  %386 = vmatprep.subr.mxu0 0.0
  %387 = vmatpush1.msra.mxu0 0.0
  %388 = vmatprep.subr.mxu0 0.0
  %389 = vmatpush1.msra.mxu0 0.0
  %390 = vmatprep.subr.mxu0 0.0
  %391 = vmatpush1.msra.mxu0 0.0
  %392 = vmatprep.subr.mxu0 0.0
  %393 = vmatpush1.msra.mxu0 0.0
  %394 = vmatprep.subr.mxu0 0.0
  %395 = vmatpush1.msra.mxu0 0.0
  %396 = vmatprep.subr.mxu0 0.0
  %397 = vmatpush1.msra.mxu0 0.0
  %398 = vmatprep.subr.mxu0 0.0
  %399 = vmatpush1.msra.mxu0 0.0
  %400 = vmatprep.subr.mxu0 0.0
  %401 = vmatpush1.msra.mxu0 0.0
  %402 = vmatprep.subr.mxu0 0.0
  %403 = vmatpush1.msra.mxu0 0.0
  %404 = vmatprep.subr.mxu0 0.0
  %405 = vmatpush1.msra.mxu0 0.0
  %406 = vmatprep.subr.mxu0 0.0
  %407 = vmatpush1.msra.mxu0 0.0
  %408 = vmatprep.subr.mxu0 0.0
  %409 = vmatpush1.msra.mxu0 0.0
  %410 = vmatprep.subr.mxu0 0.0
  %411 = vmatpush1.msra.mxu0 0.0
  %412 = vmatprep.subr.mxu0 0.0
  %413 = vmatpush1.msra.mxu0 0.0
  %414 = vmatprep.subr.mxu0 0.0
  %415 = vmatpush1.msra.mxu0 0.0
  %416 = vmatprep.subr.mxu0 0.0
  %417 = vmatpush1.msra.mxu0 0.0
  %418 = vmatprep.subr.mxu0 0.0
  %419 = vmatpush1.msra.mxu0 0.0
  %420 = vmatprep.subr.mxu0 0.0
  %421 = vmatpush1.msra.mxu0 0.0
  %422 = vmatprep.subr.mxu0 0.0
  %423 = vmatpush1.msra.mxu0 0.0
  %424 = vmatprep.subr.mxu0 0.0
  %425 = vmatpush1.msra.mxu0 0.0
  %426 = vmatprep.mubr.f32.mxu0 0.0
  %427 = vmatmul.mubr.f32.gmra.mrb[0].mxu0 %v360
  %v428 = vpop.f32.mrb[0].mxu0
  %v429 = vadd.f32 %v357, %v428
  %v430 = vpop.f32.mrb[0].mxu0
  %431 = vdwg.mxu0
  %v432 = vld [vmem:[%s7] sm:$0xff]
  %v433 = vld [vmem:[%s7 + $0x8] sm:$0xff]
  %v434 = vld [vmem:[%s7 + $0x10] sm:$0xff]
  %v435 = vld [vmem:[%s7 + $0x18] sm:$0xff]
  %v436 = vld [vmem:[%s8] sm:$0xff]
  %v437 = vld [vmem:[%s8 + $0x8] sm:$0xff]
  %v438 = vld [vmem:[%s8 + $0x10] sm:$0xff]
  %v439 = vld [vmem:[%s8 + $0x18] sm:$0xff]
  %441 = vset.pattern.permute.xlu0 0
  %442 = vperm.xlu0 %441, %v436
  %v443 = vpop.permute.xlu0 %442
  %446 = vset.pattern.permute.xlu0 0
  %447 = vperm.xlu0 %446, %v437
  %v448 = vpop.permute.xlu0 %447
  %451 = vset.pattern.permute.xlu0 0
  %452 = vperm.xlu0 %451, %v438
  %v453 = vpop.permute.xlu0 %452
  %456 = vset.pattern.permute.xlu0 0
  %457 = vperm.xlu0 %456, %v439
  %v458 = vpop.permute.xlu0 %457
  %v461 = vsel %vm254, %v432, 0
  %v464 = vsel %vm254, %v433, 0
  %v467 = vsel %vm254, %v434, 0
  %v470 = vsel %vm254, %v435, 0
  %472 = vmatprep.subr.mxu0 0.0
  %473 = vmatpush1.msra.mxu0 %v208
  %474 = vmatprep.subr.mxu0 0.0
  %475 = vmatpush1.msra.mxu0 %v213
  %476 = vmatprep.subr.mxu0 0.0
  %477 = vmatpush1.msra.mxu0 %v218
  %478 = vmatprep.subr.mxu0 0.0
  %479 = vmatpush1.msra.mxu0 %v223
  %480 = vmatprep.subr.mxu0 0.0
  %481 = vmatpush1.msra.mxu0 0.0
  %482 = vmatprep.subr.mxu0 0.0
  %483 = vmatpush1.msra.mxu0 0.0
  %484 = vmatprep.subr.mxu0 0.0
  %485 = vmatpush1.msra.mxu0 0.0
  %486 = vmatprep.subr.mxu0 0.0
  %487 = vmatpush1.msra.mxu0 0.0
  %488 = vmatprep.subr.mxu0 0.0
  %489 = vmatpush1.msra.mxu0 0.0
  %490 = vmatprep.subr.mxu0 0.0
  %491 = vmatpush1.msra.mxu0 0.0
  %492 = vmatprep.subr.mxu0 0.0
  %493 = vmatpush1.msra.mxu0 0.0
  %494 = vmatprep.subr.mxu0 0.0
  %495 = vmatpush1.msra.mxu0 0.0
  %496 = vmatprep.subr.mxu0 0.0
  %497 = vmatpush1.msra.mxu0 0.0
  %498 = vmatprep.subr.mxu0 0.0
  %499 = vmatpush1.msra.mxu0 0.0
  %500 = vmatprep.subr.mxu0 0.0
  %501 = vmatpush1.msra.mxu0 0.0
  %502 = vmatprep.subr.mxu0 0.0
  %503 = vmatpush1.msra.mxu0 0.0
  %504 = vmatprep.subr.mxu0 0.0
  %505 = vmatpush1.msra.mxu0 0.0
  %506 = vmatprep.subr.mxu0 0.0
  %507 = vmatpush1.msra.mxu0 0.0
  %508 = vmatprep.subr.mxu0 0.0
  %509 = vmatpush1.msra.mxu0 0.0
  %510 = vmatprep.subr.mxu0 0.0
  %511 = vmatpush1.msra.mxu0 0.0
  %512 = vmatprep.subr.mxu0 0.0
  %513 = vmatpush1.msra.mxu0 0.0
  %514 = vmatprep.subr.mxu0 0.0
  %515 = vmatpush1.msra.mxu0 0.0
  %516 = vmatprep.subr.mxu0 0.0
  %517 = vmatpush1.msra.mxu0 0.0
  %518 = vmatprep.subr.mxu0 0.0
  %519 = vmatpush1.msra.mxu0 0.0
  %520 = vmatprep.subr.mxu0 0.0
  %521 = vmatpush1.msra.mxu0 0.0
  %522 = vmatprep.subr.mxu0 0.0
  %523 = vmatpush1.msra.mxu0 0.0
  %524 = vmatprep.subr.mxu0 0.0
  %525 = vmatpush1.msra.mxu0 0.0
  %526 = vmatprep.subr.mxu0 0.0
  %527 = vmatpush1.msra.mxu0 0.0
  %528 = vmatprep.subr.mxu0 0.0
  %529 = vmatpush1.msra.mxu0 0.0
  %530 = vmatprep.subr.mxu0 0.0
  %531 = vmatpush1.msra.mxu0 0.0
  %532 = vmatprep.subr.mxu0 0.0
  %533 = vmatpush1.msra.mxu0 0.0
  %534 = vmatprep.subr.mxu0 0.0
  %535 = vmatpush1.msra.mxu0 0.0
  %536 = vmatprep.mubr.f32.mxu0 0.0
  %537 = vmatmul.mubr.f32.gmra.mrb[0].mxu0 %v461
  %v538 = vpop.f32.mrb[0].mxu0
  %v539 = vadd.f32 %v443, %v538
  %v540 = vpop.f32.mrb[0].mxu0
  %541 = vmatprep.mubr.f32.mxu0 0.0
  %542 = vmatmul.mubr.f32.gmra.mrb[0].mxu0 %v464
  %v543 = vpop.f32.mrb[0].mxu0
  %v544 = vadd.f32 %v448, %v543
  %v545 = vpop.f32.mrb[0].mxu0
  %546 = vmatprep.mubr.f32.mxu0 0.0
  %547 = vmatmul.mubr.f32.gmra.mrb[0].mxu0 %v467
  %v548 = vpop.f32.mrb[0].mxu0
  %v549 = vadd.f32 %v453, %v548
  %v550 = vpop.f32.mrb[0].mxu0
  %551 = vmatprep.mubr.f32.mxu0 0.0
  %552 = vmatmul.mubr.f32.gmra.mrb[0].mxu0 %v470
  %v553 = vpop.f32.mrb[0].mxu0
  %v554 = vadd.f32 %v458, %v553
  %v555 = vpop.f32.mrb[0].mxu0
  %556 = vdwg.mxu0
  %v557 = vld [vmem:[%s9] sm:$0xff]
  %v558 = vld [vmem:[%s10] sm:$0xff]
  %560 = vset.pattern.permute.xlu0 0
  %561 = vperm.xlu0 %560, %v558
  %v562 = vpop.permute.xlu0 %561
  %v565 = vsel %vm254, %v557, 0
  %567 = vmatprep.subr.mxu0 0.0
  %568 = vmatpush1.msra.mxu0 %v539
  %569 = vmatprep.subr.mxu0 0.0
  %570 = vmatpush1.msra.mxu0 %v544
  %571 = vmatprep.subr.mxu0 0.0
  %572 = vmatpush1.msra.mxu0 %v549
  %573 = vmatprep.subr.mxu0 0.0
  %574 = vmatpush1.msra.mxu0 %v554
  %575 = vmatprep.subr.mxu0 0.0
  %576 = vmatpush1.msra.mxu0 0.0
  %577 = vmatprep.subr.mxu0 0.0
  %578 = vmatpush1.msra.mxu0 0.0
  %579 = vmatprep.subr.mxu0 0.0
  %580 = vmatpush1.msra.mxu0 0.0
  %581 = vmatprep.subr.mxu0 0.0
  %582 = vmatpush1.msra.mxu0 0.0
  %583 = vmatprep.subr.mxu0 0.0
  %584 = vmatpush1.msra.mxu0 0.0
  %585 = vmatprep.subr.mxu0 0.0
  %586 = vmatpush1.msra.mxu0 0.0
  %587 = vmatprep.subr.mxu0 0.0
  %588 = vmatpush1.msra.mxu0 0.0
  %589 = vmatprep.subr.mxu0 0.0
  %590 = vmatpush1.msra.mxu0 0.0
  %591 = vmatprep.subr.mxu0 0.0
  %592 = vmatpush1.msra.mxu0 0.0
  %593 = vmatprep.subr.mxu0 0.0
  %594 = vmatpush1.msra.mxu0 0.0
  %595 = vmatprep.subr.mxu0 0.0
  %596 = vmatpush1.msra.mxu0 0.0
  %597 = vmatprep.subr.mxu0 0.0
  %598 = vmatpush1.msra.mxu0 0.0
  %599 = vmatprep.subr.mxu0 0.0
  %600 = vmatpush1.msra.mxu0 0.0
  %601 = vmatprep.subr.mxu0 0.0
  %602 = vmatpush1.msra.mxu0 0.0
  %603 = vmatprep.subr.mxu0 0.0
  %604 = vmatpush1.msra.mxu0 0.0
  %605 = vmatprep.subr.mxu0 0.0
  %606 = vmatpush1.msra.mxu0 0.0
  %607 = vmatprep.subr.mxu0 0.0
  %608 = vmatpush1.msra.mxu0 0.0
  %609 = vmatprep.subr.mxu0 0.0
  %610 = vmatpush1.msra.mxu0 0.0
  %611 = vmatprep.subr.mxu0 0.0
  %612 = vmatpush1.msra.mxu0 0.0
  %613 = vmatprep.subr.mxu0 0.0
  %614 = vmatpush1.msra.mxu0 0.0
  %615 = vmatprep.subr.mxu0 0.0
  %616 = vmatpush1.msra.mxu0 0.0
  %617 = vmatprep.subr.mxu0 0.0
  %618 = vmatpush1.msra.mxu0 0.0
  %619 = vmatprep.subr.mxu0 0.0
  %620 = vmatpush1.msra.mxu0 0.0
  %621 = vmatprep.subr.mxu0 0.0
  %622 = vmatpush1.msra.mxu0 0.0
  %623 = vmatprep.subr.mxu0 0.0
  %624 = vmatpush1.msra.mxu0 0.0
  %625 = vmatprep.subr.mxu0 0.0
  %626 = vmatpush1.msra.mxu0 0.0
  %627 = vmatprep.subr.mxu0 0.0
  %628 = vmatpush1.msra.mxu0 0.0
  %629 = vmatprep.subr.mxu0 0.0
  %630 = vmatpush1.msra.mxu0 0.0
  %631 = vmatprep.mubr.f32.mxu0 0.0
  %632 = vmatmul.mubr.f32.gmra.mrb[0].mxu0 %v565
  %v633 = vpop.f32.mrb[0].mxu0
  %v634 = vadd.f32 %v562, %v633
  %v635 = vpop.f32.mrb[0].mxu0
  %636 = vdwg.mxu0
  %v637 = vmul.f32 %v634, 1.442695
  %v638 = vpow.pop %v637
  %vm639 = vcmask 64512
  %640 = vst.msk [vmem:[%s11] sm:$0xff] %vm639, %v429
  %641 = vst.msk [vmem:[%s11 + $0x8] sm:$0xff] %vm639, %v638
  // Predicated region
  $region46: #{tpu_custom_call.1} parent=0 // pred_check
    _
  $region47: #{tpu_custom_call.1} parent=0 // pred_check_branch
    %643 = sbr.rel (0) target = $region49
  $region48: #{tpu_custom_call.1} parent=0 // pred_region
    _
  $region49: #{tpu_custom_call.1} parent=0 // pred_fallthru
    _
  // Predicated region
  $region50: #{tpu_custom_call.1} parent=0 // pred_check
    _
  $region51: #{tpu_custom_call.1} parent=0 // pred_check_branch
    %645 = sbr.rel (0) target = $region53
  $region52: #{tpu_custom_call.1} parent=0 // pred_region
    _
  $region53: #{tpu_custom_call.1} parent=0 // pred_fallthru
    _

</llo_original>
